<compile_context>
chip_gen: v7x
topology: tpu7x:2x2x1
jax: 0.10.0
libtpu: 0.0.40
codegen_flags: <defaults>
</compile_context>

<pallas_src>
import jax
import jax.numpy as jnp
from jax.experimental import pallas as pl
from jax.experimental.pallas import tpu as pltpu

LEAK = 0.2
BN_EPS = 1e-5


def _round_up(x, m):
    return ((x + m - 1) // m) * m


def _vmem_capacity_bytes():
    try:
        return int(pltpu.get_tpu_info().vmem_capacity_bytes)
    except Exception:
        return 64 * 1024 * 1024  # conservative default (v7x per-core VMEM)


def _choose_tile_m(m, k9p, cip, c4p, budget_bytes):
    # Rough per-row VMEM cost of the fused kernel (double-buffered I/O tiles +
    # in-kernel intermediates), in bytes.
    per_row = (
        2 * (4 * k9p * 2)   # xcol tile (bf16), double buffered
        + 2 * (c4p * 4)     # z tile (f32), double buffered
        + 4 * k9p * 2       # reshape copy slack (bf16)
        + 4 * cip * 4       # y4 (f32)
        + cip * 6           # y (f32) + y (bf16)
    )
    tm = max(8, min(1024, budget_bytes // max(per_row, 1)))
    tm = max(8, (tm // 8) * 8)
    tm = min(tm, max(8, _round_up(m, 8)))
    return int(tm)


def _down_up_kernel(xcol_ref, wdn_ref, wup_ref, z_ref, psum_ref, psq_ref):
    """Fused down+up path for one tile of TM pooled-output rows.

    xcol_ref : [4, TM, K9p] bf16  im2col patches (LeakyReLU pre-applied),
                                  k = a*2+b position inside the 2x2 pool window
    wdn_ref  : [K9p, Cip]   bf16  conv3x3 weight as a matrix (resident)
    wup_ref  : [Cip, C4p]   bf16  convT2x2 weight, lane = k*Cout_pad + co (resident)
    z_ref    : [TM, C4p]    f32   pre-BN up-path output (lane-dense)
    psum_ref : [1, 8, C4p]  f32   per-tile per-lane sum of z   (sublane-broadcast)
    psq_ref  : [1, 8, C4p]  f32   per-tile per-lane sum of z*z (sublane-broadcast)
    """
    tm = xcol_ref.shape[1]
    k9p = xcol_ref.shape[2]
    c4p = z_ref.shape[1]

    # One MXU call covering all 4 pool-window positions: [4*TM, K9p] @ [K9p, Cip].
    x4 = xcol_ref[...].reshape(4 * tm, k9p)
    y4 = jnp.dot(x4, wdn_ref[...], preferred_element_type=jnp.float32)

    # MaxPool2d(2) == max over the 4 pool-window positions, then LeakyReLU(0.2).
    y = jnp.maximum(jnp.maximum(y4[0 * tm:1 * tm], y4[1 * tm:2 * tm]),
                    jnp.maximum(y4[2 * tm:3 * tm], y4[3 * tm:4 * tm]))
    y = jnp.where(y > 0, y, LEAK * y).astype(wup_ref.dtype)

    # One MXU call covering all 4 transposed-conv taps -> lane-dense output.
    z = jnp.dot(y, wup_ref[...], preferred_element_type=jnp.float32)
    z_ref[...] = z

    # Per-tile partial BatchNorm statistics (combined across tiles in the wrapper;
    # zero-padded rows/lanes contribute exactly zero).
    s = jnp.sum(z, axis=0, keepdims=True)
    sq = jnp.sum(z * z, axis=0, keepdims=True)
    psum_ref[0] = jnp.broadcast_to(s, (8, c4p))
    psq_ref[0] = jnp.broadcast_to(sq, (8, c4p))


def _bn_apply_kernel(z_ref, scale_ref, shift_ref, out_ref):
    # out = z * (gamma * rsqrt(var+eps)) + (beta - mean * gamma * rsqrt(var+eps))
    out_ref[...] = z_ref[...] * scale_ref[...] + shift_ref[...]


def unet_innermost_forward(x_nchw, params):
    w_down = params["w_down"].astype(jnp.float32)  # [Cinner, Cin, 3, 3]
    w_up = params["w_up"].astype(jnp.float32)      # [Cinner, Cout, 2, 2]
    gamma = params["gamma"].astype(jnp.float32)    # [Cout]
    beta = params["beta"].astype(jnp.float32)      # [Cout]

    N, Cin, H, W = x_nchw.shape
    assert H % 2 == 0 and W % 2 == 0
    Cinner = w_down.shape[0]
    Cout = w_up.shape[1]
    Hp, Wp = H // 2, W // 2
    M = N * Hp * Wp

    K9 = 9 * Cin
    K9p = _round_up(K9, 128)        # lane-pad the im2col / contraction dim
    Cip = _round_up(Cinner, 128)    # lane-pad inner channels
    Cout_pad = _round_up(Cout, 32)  # per-tap block; 4*Cout_pad is a multiple of 128
    C4p = 4 * Cout_pad

    # Generation-aware tile sizing (v7x: 64 MiB VMEM/TC; v5e/v6e: 128 MiB).
    vmem_cap = _vmem_capacity_bytes()
    vmem_limit = int(min(vmem_cap // 2, 64 * 1024 * 1024))
    weight_bytes = 2 * 2 * (K9p * Cip + Cip * C4p)          # bf16, double-buffered
    tile_budget = max(4 * 1024 * 1024, (vmem_limit * 3) // 4 - weight_bytes)
    TM = _choose_tile_m(M, K9p, Cip, C4p, tile_budget)
    M_pad = _round_up(M, TM)
    G = M_pad // TM

    # ---- JAX-side layout glue. Leaky is applied BEFORE im2col so it is not
    # ---- recomputed on replicated patches; bf16 halves the im2col footprint.
    x_f32 = x_nchw.astype(jnp.float32)
    x_nhwc = jnp.transpose(x_f32, (0, 2, 3, 1))
    x_act = jnp.where(x_nhwc > 0, x_nhwc, LEAK * x_nhwc).astype(jnp.bfloat16)
    xpad = jnp.pad(x_act, ((0, 0), (1, 1), (1, 1), (0, 0)))

    # TODO(synk): im2col is still materialized by XLA in HBM; a halo-DMA Pallas
    # gather (memory_space=pl.ANY + make_async_copy) would cut HBM traffic further.
    cols = []
    for a in range(2):
        for b in range(2):
            taps = []
            for dy in range(3):
                for dx in range(3):
                    taps.append(xpad[:, a + dy:a + dy + H:2, b + dx:b + dx + W:2, :])
            cols.append(jnp.concatenate(taps, axis=-1).reshape(M, K9))
    xcol = jnp.stack(cols, axis=0)                                   # [4, M, K9] bf16
    xcol = jnp.pad(xcol, ((0, 0), (0, M_pad - M), (0, K9p - K9)))    # zero-pad rows/lanes

    # Conv2d weight [Cinner, Cin, 3, 3] -> [K9p, Cip], rows ordered (dy, dx, ci).
    w_mat = jnp.transpose(w_down, (2, 3, 1, 0)).reshape(K9, Cinner)
    w_mat = jnp.pad(w_mat, ((0, K9p - K9), (0, Cip - Cinner))).astype(jnp.bfloat16)

    # ConvTranspose2d weight [Cinner, Cout, 2, 2] -> [Cip, 4*Cout_pad],
    # lane index = (a*2+b)*Cout_pad + co.
    w_up_t = jnp.transpose(w_up, (0, 2, 3, 1))                       # [Cinner, 2, 2, Cout]
    w_up_t = jnp.pad(w_up_t, ((0, Cip - Cinner), (0, 0), (0, 0), (0, Cout_pad - Cout)))
    w_up_flat = w_up_t.reshape(Cip, C4p).astype(jnp.bfloat16)

    cparams = pltpu.CompilerParams(
        dimension_semantics=("parallel",),   # split the M-tile grid across TCs (v7x)
        vmem_limit_bytes=vmem_limit,
    )

    # Pass 1: fused leaky+conv3x3+maxpool2 and leaky+convT2x2 (pre-BN) + BN partials.
    z, psum, psq = pl.pallas_call(
        _down_up_kernel,
        grid=(G,),
        out_shape=(
            jax.ShapeDtypeStruct((M_pad, C4p), jnp.float32),
            jax.ShapeDtypeStruct((G, 8, C4p), jnp.float32),
            jax.ShapeDtypeStruct((G, 8, C4p), jnp.float32),
        ),
        in_specs=[
            pl.BlockSpec((4, TM, K9p), lambda i: (0, i, 0)),
            pl.BlockSpec((K9p, Cip), lambda i: (0, 0)),    # resident weight
            pl.BlockSpec((Cip, C4p), lambda i: (0, 0)),    # resident weight
        ],
        out_specs=(
            pl.BlockSpec((TM, C4p), lambda i: (i, 0)),
            pl.BlockSpec((1, 8, C4p), lambda i: (i, 0, 0)),
            pl.BlockSpec((1, 8, C4p), lambda i: (i, 0, 0)),
        ),
        compiler_params=cparams,
    )(xcol, w_mat, w_up_flat)

    # Finalize BatchNorm statistics (tiny XLA reduction over per-tile partials).
    # Padded rows/lanes contribute exactly 0, so dividing by the true count is exact.
    cnt = jnp.float32(4 * M)                                         # = N * H * W
    sum_c = jnp.sum(psum[:, 0, :], axis=0).reshape(4, Cout_pad).sum(axis=0)
    sq_c = jnp.sum(psq[:, 0, :], axis=0).reshape(4, Cout_pad).sum(axis=0)
    mean_c = sum_c / cnt
    var_c = jnp.maximum(sq_c / cnt - mean_c * mean_c, 0.0)           # biased var (train BN)
    inv_c = jax.lax.rsqrt(var_c + BN_EPS)
    gamma_p = jnp.pad(gamma, (0, Cout_pad - Cout))
    beta_p = jnp.pad(beta, (0, Cout_pad - Cout))
    scale = jnp.tile(gamma_p * inv_c, 4).reshape(1, C4p)
    shift = jnp.tile(beta_p - mean_c * gamma_p * inv_c, 4).reshape(1, C4p)

    # Pass 2: apply the per-channel affine normalization (lane-dense elementwise).
    up_flat = pl.pallas_call(
        _bn_apply_kernel,
        grid=(G,),
        out_shape=jax.ShapeDtypeStruct((M_pad, C4p), jnp.float32),
        in_specs=[
            pl.BlockSpec((TM, C4p), lambda i: (i, 0)),
            pl.BlockSpec((1, C4p), lambda i: (0, 0)),
            pl.BlockSpec((1, C4p), lambda i: (0, 0)),
        ],
        out_specs=pl.BlockSpec((TM, C4p), lambda i: (i, 0)),
        compiler_params=cparams,
    )(z, scale, shift)

    # Pixel-shuffle glue: [M, 4*Cout_pad] -> [N, Cout, H, W] with a single transpose.
    up = up_flat[:M].reshape(N, Hp, Wp, 4, Cout_pad)[..., :Cout]
    up = up.reshape(N, Hp, Wp, 2, 2, Cout)
    up_nchw = jnp.transpose(up, (0, 5, 1, 3, 2, 4)).reshape(N, Cout, H, W)

    # torch.cat([x, up], dim=1)  (in-place LeakyReLU aliasing of the torch module
    # is not replicated: the skip carries the original x).
    return jnp.concatenate([x_f32, up_nchw], axis=1)


def _reference_forward(x, params):
    """Pure-JAX f32 reference for the innermost block forward."""
    w_down, w_up = params["w_down"], params["w_up"]
    gamma, beta = params["gamma"], params["beta"]
    N, Cin, H, W = x.shape
    Cinner, Cout = w_down.shape[0], w_up.shape[1]
    xr = jnp.where(x > 0, x, LEAK * x)
    y = jax.lax.conv_general_dilated(
        xr, w_down, window_strides=(1, 1), padding=((1, 1), (1, 1)),
        dimension_numbers=("NCHW", "OIHW", "NCHW"))
    y = y.reshape(N, Cinner, H // 2, 2, W // 2, 2).max(axis=(3, 5))
    yr = jnp.where(y > 0, y, LEAK * y)
    up = jnp.einsum("ncij,cdab->ndiajb", yr, w_up).reshape(N, Cout, H, W)
    mean = up.mean(axis=(0, 2, 3), keepdims=True)
    var = up.var(axis=(0, 2, 3), keepdims=True)
    upn = (up - mean) * jax.lax.rsqrt(var + BN_EPS)
    upn = upn * gamma.reshape(1, -1, 1, 1) + beta.reshape(1, -1, 1, 1)
    return jnp.concatenate([x, upn], axis=1)


if __name__ == "__main__":
    key = jax.random.PRNGKey(0)
    N, H, W = 2, 16, 16
    outer_nc, inner_nc = 4, 8
    input_nc = outer_nc  # innermost: input_nc=None -> input_nc = outer_nc

    k1, k2, k3, k4, k5 = jax.random.split(key, 5)
    x = jax.random.normal(k1, (N, input_nc, H, W), jnp.float32)
    params = dict(
        w_down=0.1 * jax.random.normal(k2, (inner_nc, input_nc, 3, 3), jnp.float32),
        w_up=0.1 * jax.random.normal(k3, (inner_nc, outer_nc, 2, 2), jnp.float32),
        gamma=jnp.ones((outer_nc,), jnp.float32)
        + 0.1 * jax.random.normal(k4, (outer_nc,), jnp.float32),
        beta=0.1 * jax.random.normal(k5, (outer_nc,), jnp.float32),
    )

    out = jax.jit(unet_innermost_forward)(x, params)
    jax.block_until_ready(out)
    assert out.shape == (N, input_nc + outer_nc, H, W), out.shape

    ref = _reference_forward(x, params)
    err = float(jnp.max(jnp.abs(out - ref)))
    assert err < 0.15, f"max abs err vs reference: {err}"
    print("KERNEL_OK")
</pallas_src>

<mosaic_0001>
module attributes {stable_mosaic.version = 11 : i64} {
  func.func @_bn_apply_kernel(%arg0: i32, %arg1: memref<128x128xf32, #tpu.memory_space<vmem>>, %arg2: memref<1x128xf32, #tpu.memory_space<vmem>>, %arg3: memref<1x128xf32, #tpu.memory_space<vmem>>, %arg4: memref<128x128xf32, #tpu.memory_space<vmem>>) attributes {dimension_semantics = [#tpu.dimension_semantics<parallel>], iteration_bounds = array<i64: 1>, scalar_prefetch = 0 : i64, scratch_operands = 0 : i64, tpu.core_type = #tpu.core_type<tc>, window_params = [{transform_indices = @transform_0, window_bounds = array<i64: 128, 128>}, {pipeline_mode = #tpu.pipeline_mode<synchronous>, transform_indices = @transform_1, window_bounds = array<i64: 1, 128>}, {pipeline_mode = #tpu.pipeline_mode<synchronous>, transform_indices = @transform_2, window_bounds = array<i64: 1, 128>}, {transform_indices = @transform_3, window_bounds = array<i64: 128, 128>}]} {
    %c0 = arith.constant 0 : index
    %c0_0 = arith.constant 0 : index
    %0 = vector.load %arg1[%c0, %c0_0] : memref<128x128xf32, #tpu.memory_space<vmem>>, vector<128x128xf32>
    %c0_1 = arith.constant 0 : index
    %c0_2 = arith.constant 0 : index
    %1 = vector.load %arg2[%c0_1, %c0_2] : memref<1x128xf32, #tpu.memory_space<vmem>>, vector<1x128xf32>
    %2 = vector.broadcast %1 : vector<1x128xf32> to vector<128x128xf32>
    %3 = arith.mulf %0, %2 : vector<128x128xf32>
    %c0_3 = arith.constant 0 : index
    %c0_4 = arith.constant 0 : index
    %4 = vector.load %arg3[%c0_3, %c0_4] : memref<1x128xf32, #tpu.memory_space<vmem>>, vector<1x128xf32>
    %5 = vector.broadcast %4 : vector<1x128xf32> to vector<128x128xf32>
    %6 = arith.addf %3, %5 : vector<128x128xf32>
    %c0_5 = arith.constant 0 : index
    %c0_6 = arith.constant 0 : index
    %7 = vector.load %arg4[%c0_5, %c0_6] : memref<128x128xf32, #tpu.memory_space<vmem>>, vector<128x128xf32>
    tpu.vector_store %arg4[%c0_5, %c0_6], %6 {strides = array<i32>} : memref<128x128xf32, #tpu.memory_space<vmem>>, vector<128x128xf32>,
    return
  }
  func.func @transform_0(%arg0: i32) -> (i32, i32) {
    %c0_i32 = arith.constant 0 : i32
    %c0_i32_0 = arith.constant 0 : i32
    return %arg0, %c0_i32 : i32, i32
  }
  func.func @transform_1(%arg0: i32) -> (i32, i32) {
    %c0_i32 = arith.constant 0 : i32
    %c0_i32_0 = arith.constant 0 : i32
    %c0_i32_1 = arith.constant 0 : i32
    return %c0_i32, %c0_i32_0 : i32, i32
  }
  func.func @transform_2(%arg0: i32) -> (i32, i32) {
    %c0_i32 = arith.constant 0 : i32
    %c0_i32_0 = arith.constant 0 : i32
    %c0_i32_1 = arith.constant 0 : i32
    return %c0_i32, %c0_i32_0 : i32, i32
  }
  func.func @transform_3(%arg0: i32) -> (i32, i32) {
    %c0_i32 = arith.constant 0 : i32
    %c0_i32_0 = arith.constant 0 : i32
    return %arg0, %c0_i32 : i32, i32
  }
}

module attributes {stable_mosaic.version = 11 : i64} {
  func.func @_down_up_kernel(%arg0: i32, %arg1: memref<4x128x128xbf16, #tpu.memory_space<vmem>>, %arg2: memref<128x128xbf16, #tpu.memory_space<vmem>>, %arg3: memref<128x128xbf16, #tpu.memory_space<vmem>>, %arg4: memref<128x128xf32, #tpu.memory_space<vmem>>, %arg5: memref<1x8x128xf32, #tpu.memory_space<vmem>>, %arg6: memref<1x8x128xf32, #tpu.memory_space<vmem>>) attributes {dimension_semantics = [#tpu.dimension_semantics<parallel>], iteration_bounds = array<i64: 1>, scalar_prefetch = 0 : i64, scratch_operands = 0 : i64, tpu.core_type = #tpu.core_type<tc>, window_params = [{transform_indices = @transform_0, window_bounds = array<i64: 4, 128, 128>}, {pipeline_mode = #tpu.pipeline_mode<synchronous>, transform_indices = @transform_1, window_bounds = array<i64: 128, 128>}, {pipeline_mode = #tpu.pipeline_mode<synchronous>, transform_indices = @transform_2, window_bounds = array<i64: 128, 128>}, {transform_indices = @transform_3, window_bounds = array<i64: 128, 128>}, {transform_indices = @transform_4, window_bounds = array<i64: 1, 8, 128>}, {transform_indices = @transform_5, window_bounds = array<i64: 1, 8, 128>}]} {
    %c0 = arith.constant 0 : index
    %c0_0 = arith.constant 0 : index
    %c0_1 = arith.constant 0 : index
    %0 = vector.load %arg1[%c0, %c0_0, %c0_1] : memref<4x128x128xbf16, #tpu.memory_space<vmem>>, vector<4x128x128xbf16>
    %1 = vector.shape_cast %0 : vector<4x128x128xbf16> to vector<512x128xbf16>
    %c0_2 = arith.constant 0 : index
    %c0_3 = arith.constant 0 : index
    %2 = vector.load %arg2[%c0_2, %c0_3] : memref<128x128xbf16, #tpu.memory_space<vmem>>, vector<128x128xbf16>
    %cst = arith.constant dense<0.000000e+00> : vector<512x128xf32>
    %3 = tpu.matmul %1, %2, %cst {dimension_numbers = #tpu.dot_dimension_numbers<[1], [0], [0], [1], [0, 0, 1, 1], [], []>} : vector<512x128xbf16>, vector<128x128xbf16>, vector<512x128xf32> -> vector<512x128xf32>
    %4 = vector.extract_strided_slice %3 {offsets = [0, 0], sizes = [128, 128], strides = [1, 1]} : vector<512x128xf32> to vector<128x128xf32>
    %5 = vector.extract_strided_slice %3 {offsets = [128, 0], sizes = [128, 128], strides = [1, 1]} : vector<512x128xf32> to vector<128x128xf32>
    %6 = arith.maximumf %4, %5 : vector<128x128xf32>
    %7 = vector.extract_strided_slice %3 {offsets = [256, 0], sizes = [128, 128], strides = [1, 1]} : vector<512x128xf32> to vector<128x128xf32>
    %8 = vector.extract_strided_slice %3 {offsets = [384, 0], sizes = [128, 128], strides = [1, 1]} : vector<512x128xf32> to vector<128x128xf32>
    %9 = arith.maximumf %7, %8 : vector<128x128xf32>
    %10 = arith.maximumf %6, %9 : vector<128x128xf32>
    %cst_4 = arith.constant 0.000000e+00 : f32
    %11 = vector.broadcast %cst_4 : f32 to vector<128x128xf32>
    %12 = arith.cmpf ogt, %10, %11 : vector<128x128xf32>
    %cst_5 = arith.constant 2.000000e-01 : f32
    %13 = vector.broadcast %cst_5 : f32 to vector<128x128xf32>
    %14 = arith.mulf %13, %10 : vector<128x128xf32>
    %15 = arith.select %12, %10, %14 : vector<128x128xi1>, vector<128x128xf32>
    %16 = arith.truncf %15 : vector<128x128xf32> to vector<128x128xbf16>
    %c0_6 = arith.constant 0 : index
    %c0_7 = arith.constant 0 : index
    %17 = vector.load %arg3[%c0_6, %c0_7] : memref<128x128xbf16, #tpu.memory_space<vmem>>, vector<128x128xbf16>
    %cst_8 = arith.constant dense<0.000000e+00> : vector<128x128xf32>
    %18 = tpu.matmul %16, %17, %cst_8 {dimension_numbers = #tpu.dot_dimension_numbers<[1], [0], [0], [1], [0, 0, 1, 1], [], []>} : vector<128x128xbf16>, vector<128x128xbf16>, vector<128x128xf32> -> vector<128x128xf32>
    %c0_9 = arith.constant 0 : index
    %c0_10 = arith.constant 0 : index
    %19 = vector.load %arg4[%c0_9, %c0_10] : memref<128x128xf32, #tpu.memory_space<vmem>>, vector<128x128xf32>
    tpu.vector_store %arg4[%c0_9, %c0_10], %18 {strides = array<i32>} : memref<128x128xf32, #tpu.memory_space<vmem>>, vector<128x128xf32>,
    %cst_11 = arith.constant dense<0.000000e+00> : vector<128xf32>
    %20 = vector.multi_reduction <add>, %18, %cst_11 [0] : vector<128x128xf32> to vector<128xf32>
    %21 = vector.shape_cast %20 : vector<128xf32> to vector<1x128xf32>
    %22 = arith.mulf %18, %18 : vector<128x128xf32>
    %cst_12 = arith.constant dense<0.000000e+00> : vector<128xf32>
    %23 = vector.multi_reduction <add>, %22, %cst_12 [0] : vector<128x128xf32> to vector<128xf32>
    %24 = vector.shape_cast %23 : vector<128xf32> to vector<1x128xf32>
    %25 = vector.shape_cast %21 : vector<1x128xf32> to vector<1x128xf32>
    %26 = vector.broadcast %25 : vector<1x128xf32> to vector<8x128xf32>
    %c0_13 = arith.constant 0 : index
    %c0_14 = arith.constant 0 : index
    %c0_15 = arith.constant 0 : index
    %27 = vector.load %arg5[%c0_13, %c0_14, %c0_15] : memref<1x8x128xf32, #tpu.memory_space<vmem>>, vector<1x8x128xf32>
    %28 = vector.shape_cast %27 : vector<1x8x128xf32> to vector<8x128xf32>
    %29 = vector.shape_cast %26 : vector<8x128xf32> to vector<1x8x128xf32>
    tpu.vector_store %arg5[%c0_13, %c0_14, %c0_15], %29 {strides = array<i32>} : memref<1x8x128xf32, #tpu.memory_space<vmem>>, vector<1x8x128xf32>,
    %30 = vector.shape_cast %24 : vector<1x128xf32> to vector<1x128xf32>
    %31 = vector.broadcast %30 : vector<1x128xf32> to vector<8x128xf32>
    %c0_16 = arith.constant 0 : index
    %c0_17 = arith.constant 0 : index
    %c0_18 = arith.constant 0 : index
    %32 = vector.load %arg6[%c0_16, %c0_17, %c0_18] : memref<1x8x128xf32, #tpu.memory_space<vmem>>, vector<1x8x128xf32>
    %33 = vector.shape_cast %32 : vector<1x8x128xf32> to vector<8x128xf32>
    %34 = vector.shape_cast %31 : vector<8x128xf32> to vector<1x8x128xf32>
    tpu.vector_store %arg6[%c0_16, %c0_17, %c0_18], %34 {strides = array<i32>} : memref<1x8x128xf32, #tpu.memory_space<vmem>>, vector<1x8x128xf32>,
    return
  }
  func.func @transform_0(%arg0: i32) -> (i32, i32, i32) {
    %c0_i32 = arith.constant 0 : i32
    %c0_i32_0 = arith.constant 0 : i32
    %c0_i32_1 = arith.constant 0 : i32
    return %c0_i32, %arg0, %c0_i32_0 : i32, i32, i32
  }
  func.func @transform_1(%arg0: i32) -> (i32, i32) {
    %c0_i32 = arith.constant 0 : i32
    %c0_i32_0 = arith.constant 0 : i32
    %c0_i32_1 = arith.constant 0 : i32
    return %c0_i32, %c0_i32_0 : i32, i32
  }
  func.func @transform_2(%arg0: i32) -> (i32, i32) {
    %c0_i32 = arith.constant 0 : i32
    %c0_i32_0 = arith.constant 0 : i32
    %c0_i32_1 = arith.constant 0 : i32
    return %c0_i32, %c0_i32_0 : i32, i32
  }
  func.func @transform_3(%arg0: i32) -> (i32, i32) {
    %c0_i32 = arith.constant 0 : i32
    %c0_i32_0 = arith.constant 0 : i32
    return %arg0, %c0_i32 : i32, i32
  }
  func.func @transform_4(%arg0: i32) -> (i32, i32, i32) {
    %c0_i32 = arith.constant 0 : i32
    %c0_i32_0 = arith.constant 0 : i32
    %c0_i32_1 = arith.constant 0 : i32
    return %arg0, %c0_i32, %c0_i32_0 : i32, i32, i32
  }
  func.func @transform_5(%arg0: i32) -> (i32, i32, i32) {
    %c0_i32 = arith.constant 0 : i32
    %c0_i32_0 = arith.constant 0 : i32
    %c0_i32_1 = arith.constant 0 : i32
    return %arg0, %c0_i32, %c0_i32_0 : i32, i32, i32
  }
}

</mosaic_0001>

<llo_original>
// kernel: tile.13
$region0: #{tile.13}
  #allocation0 [shape = 's32[1]{0}', space=sflag, size = 0x4, scoped, tag = 'scoped memory for tile.13']
  %s0 = inlined_call_operand.vmem [shape: f32[32], index: 0, kind: input, shape index: {}]
  %s1 = inlined_call_operand.vmem [shape: f32[4,32], index: 1, kind: output, shape index: {}]
  // Predicated region
  $region2: #{tile.13} parent=0 // pred_check
    _
  $region3: #{tile.13} parent=0 // pred_check_branch
    %3 = sbr.rel (0) target = $region5
  $region4: #{tile.13} parent=0 // pred_region
    _
  $region5: #{tile.13} parent=0 // pred_fallthru
    _
  %v4 = vld [vmem:[%s0] ss:$0 sm:$0xff]
  %5 = vst [vmem:[%s1] sm:$0xf] %v4

// kernel: tile.14
$region0: #{tile.14}
  %s0 = inlined_call_operand.vmem [shape: f32[4,32], index: 0, kind: input, shape index: {}]
  %s1 = inlined_call_operand.vmem [shape: f32[1,128], index: 1, kind: output, shape index: {}]
  $region1: #{tile.14} parent=0
    #allocation0 [shape = 'u8[4096]{0}', space=vmem, size = 0x1000, scoped, tag = 'scoped mem for output reshape']
    #allocation1 [shape = 'u8[4096]{0}', space=vmem, size = 0x1000, scoped, tag = 'scoped mem for input reshape']
    %s3 = sshllo.u32 0, 4
    %v4 = vld [vmem:[%s0] sm:%s3]
    %5 = vst [vmem:[#allocation1] sm:%s3] %v4
    %v6 = vld [vmem:[#allocation1] sm:$0x1]
    %vm7 = vcmask 261120
    %8 = vst.msk [vmem:[#allocation0] sm:$0x1] %vm7, %v6
    %s9 = scalar_lea.vmem [#allocation1], 3
    %v10 = vld [vmem:[%s9] sm:$0x1]
    %11 = vrot.lane.b32.xlu0 %v10, 96
    %v12 = vpop.permute.xlu0 %11
    %vm13 = vcmask 1048320
    %14 = vst.msk [vmem:[#allocation0] sm:$0x1] %vm13, %v12
    %s15 = scalar_lea.vmem [#allocation1], 2
    %v16 = vld [vmem:[%s15] sm:$0x1]
    %17 = vrot.lane.b32.xlu0 %v16, 64
    %v18 = vpop.permute.xlu0 %17
    %vm19 = vcmask 785920
    %20 = vst.msk [vmem:[#allocation0] sm:$0x1] %vm19, %v18
    %s21 = scalar_lea.vmem [#allocation1], 1
    %v22 = vld [vmem:[%s21] sm:$0x1]
    %23 = vrot.lane.b32.xlu0 %v22, 32
    %v24 = vpop.permute.xlu0 %23
    %vm25 = vcmask 523520
    %26 = vst.msk [vmem:[#allocation0] sm:$0x1] %vm25, %v24
    %s28 = sshllo.u32 0, 1
    %v30 = vld [vmem:[#allocation0] sm:%s28]
    %s31 = sshllo.u32 0, 1
    %32 = vst [vmem:[%s1] sm:%s31] %v30

// kernel: unet_innermost_forward.3
$region0: #{unet_innermost_forward.3}
  #allocation0 [shape = 'u32[]', space=smem, size = 0x4, offset = 0x4, fixed_abs, tag = 'smem constant byte address 0x4 - core index']
  #allocation1 [shape = 'u32[144,128]{1,0:T(1,128)}', space=vmem, size = 0x12000, scoped, tag = 'internal scratch']
  %s0 = inlined_call_operand.vmem [shape: f32[128,128], index: 0, kind: input, shape index: {}]
  %s1 = inlined_call_operand.vmem [shape: f32[1,128], index: 1, kind: input, shape index: {}]
  %s2 = inlined_call_operand.vmem [shape: f32[1,128], index: 2, kind: input, shape index: {}]
  %s3 = inlined_call_operand.vmem [shape: f32[128,128], index: 3, kind: output, shape index: {}]
  %s4 = sld [smem:[#allocation0]]
  $region22: #{unet_innermost_forward.3} parent=0
    _
  %s6 = ssub.s32 1, %s4
  %s7 = scalar_select 0, %s6, %s4
  // Predicated region
  $region2: #{unet_innermost_forward.3} parent=0 // pred_check
    _
  $region3: #{unet_innermost_forward.3} parent=0 // pred_check_branch
    %9 = sbr.rel (0) target = $region5
  $region4: #{unet_innermost_forward.3} parent=0 // pred_region
    _
  $region5: #{unet_innermost_forward.3} parent=0 // pred_fallthru
    _
  // Predicated region
  $region6: #{unet_innermost_forward.3} parent=0 // pred_check
    _
  $region7: #{unet_innermost_forward.3} parent=0 // pred_check_branch
    %11 = sbr.rel (0) target = $region9
  $region8: #{unet_innermost_forward.3} parent=0 // pred_region
    _
  $region9: #{unet_innermost_forward.3} parent=0 // pred_fallthru
    _
  // Predicated region
  $region10: #{unet_innermost_forward.3} parent=0 // pred_check
    _
  $region11: #{unet_innermost_forward.3} parent=0 // pred_check_branch
    %13 = sbr.rel (0) target = $region13
  $region12: #{unet_innermost_forward.3} parent=0 // pred_region
    _
  $region13: #{unet_innermost_forward.3} parent=0 // pred_fallthru
    _
  %v14 = vld [vmem:[%s0] sm:$0xff]
  %v15 = vld [vmem:[%s0 + $0x8] sm:$0xff]
  %v16 = vld [vmem:[%s0 + $0x10] sm:$0xff]
  %v17 = vld [vmem:[%s0 + $0x18] sm:$0xff]
  %v18 = vld [vmem:[%s0 + $0x20] sm:$0xff]
  %v19 = vld [vmem:[%s0 + $0x28] sm:$0xff]
  %v20 = vld [vmem:[%s0 + $0x30] sm:$0xff]
  %v21 = vld [vmem:[%s0 + $0x38] sm:$0xff]
  %v22 = vld [vmem:[%s0 + $0x40] sm:$0xff]
  %v23 = vld [vmem:[%s0 + $0x48] sm:$0xff]
  %v24 = vld [vmem:[%s0 + $0x50] sm:$0xff]
  %v25 = vld [vmem:[%s0 + $0x58] sm:$0xff]
  %v26 = vld [vmem:[%s0 + $0x60] sm:$0xff]
  %v27 = vld [vmem:[%s0 + $0x68] sm:$0xff]
  %v28 = vld [vmem:[%s0 + $0x70] sm:$0xff]
  %v29 = vld [vmem:[%s0 + $0x78] sm:$0xff]
  %v30 = vld [vmem:[%s1] sm:$0x1]
  %v32 = vlaneseq
  %v33 = vshrl.u32 %v32, 7
  %v34 = vsub.s32 0, %v33
  %v35 = vrot.slane %v30, %v34
  %v37 = vmul.f32 %v14, %v35
  %v38 = vmul.f32 %v15, %v35
  %v39 = vmul.f32 %v16, %v35
  %v40 = vmul.f32 %v17, %v35
  %v41 = vmul.f32 %v18, %v35
  %v42 = vmul.f32 %v19, %v35
  %v43 = vmul.f32 %v20, %v35
  %v44 = vmul.f32 %v21, %v35
  %v45 = vmul.f32 %v22, %v35
  %v46 = vmul.f32 %v23, %v35
  %v47 = vmul.f32 %v24, %v35
  %v48 = vmul.f32 %v25, %v35
  %v49 = vmul.f32 %v26, %v35
  %v50 = vmul.f32 %v27, %v35
  %v51 = vmul.f32 %v28, %v35
  %v52 = vmul.f32 %v29, %v35
  %v53 = vld [vmem:[%s2] sm:$0x1]
  %v55 = vlaneseq
  %v56 = vshrl.u32 %v55, 7
  %v57 = vsub.s32 0, %v56
  %v58 = vrot.slane %v53, %v57
  %v60 = vadd.f32 %v37, %v58
  %v61 = vadd.f32 %v38, %v58
  %v62 = vadd.f32 %v39, %v58
  %v63 = vadd.f32 %v40, %v58
  %v64 = vadd.f32 %v41, %v58
  %v65 = vadd.f32 %v42, %v58
  %v66 = vadd.f32 %v43, %v58
  %v67 = vadd.f32 %v44, %v58
  %v68 = vadd.f32 %v45, %v58
  %v69 = vadd.f32 %v46, %v58
  %v70 = vadd.f32 %v47, %v58
  %v71 = vadd.f32 %v48, %v58
  %v72 = vadd.f32 %v49, %v58
  %v73 = vadd.f32 %v50, %v58
  %v74 = vadd.f32 %v51, %v58
  %v75 = vadd.f32 %v52, %v58
  %76 = vst [vmem:[%s3] sm:$0xff] %v60
  %77 = vst [vmem:[%s3 + $0x8] sm:$0xff] %v61
  %78 = vst [vmem:[%s3 + $0x10] sm:$0xff] %v62
  %79 = vst [vmem:[%s3 + $0x18] sm:$0xff] %v63
  %80 = vst [vmem:[%s3 + $0x20] sm:$0xff] %v64
  %81 = vst [vmem:[%s3 + $0x28] sm:$0xff] %v65
  %82 = vst [vmem:[%s3 + $0x30] sm:$0xff] %v66
  %83 = vst [vmem:[%s3 + $0x38] sm:$0xff] %v67
  %84 = vst [vmem:[%s3 + $0x40] sm:$0xff] %v68
  %85 = vst [vmem:[%s3 + $0x48] sm:$0xff] %v69
  %86 = vst [vmem:[%s3 + $0x50] sm:$0xff] %v70
  %87 = vst [vmem:[%s3 + $0x58] sm:$0xff] %v71
  %88 = vst [vmem:[%s3 + $0x60] sm:$0xff] %v72
  %89 = vst [vmem:[%s3 + $0x68] sm:$0xff] %v73
  %90 = vst [vmem:[%s3 + $0x70] sm:$0xff] %v74
  %91 = vst [vmem:[%s3 + $0x78] sm:$0xff] %v75
  // Predicated region
  $region14: #{unet_innermost_forward.3} parent=0 // pred_check
    _
  $region15: #{unet_innermost_forward.3} parent=0 // pred_check_branch
    %93 = sbr.rel (0) target = $region17
  $region16: #{unet_innermost_forward.3} parent=0 // pred_region
    _
  $region17: #{unet_innermost_forward.3} parent=0 // pred_fallthru
    _
  // Predicated region
  $region18: #{unet_innermost_forward.3} parent=0 // pred_check
    _
  $region19: #{unet_innermost_forward.3} parent=0 // pred_check_branch
    %95 = sbr.rel (0) target = $region21
  $region20: #{unet_innermost_forward.3} parent=0 // pred_region
    _
  $region21: #{unet_innermost_forward.3} parent=0 // pred_fallthru
    _

// kernel: unet_innermost_forward.2
$region0: #{unet_innermost_forward.2}
  #allocation0 [shape = 'u32[]', space=smem, size = 0x4, offset = 0x4, fixed_abs, tag = 'smem constant byte address 0x4 - core index']
  #allocation1 [shape = 'u32[144,128]{1,0:T(1,128)}', space=vmem, size = 0x12000, scoped, tag = 'internal scratch']
  %s0 = inlined_call_operand.vmem [shape: bf16[4,128,128], index: 0, kind: input, shape index: {}]
  %s1 = inlined_call_operand.vmem [shape: bf16[128,128], index: 1, kind: input, shape index: {}]
  %s2 = inlined_call_operand.vmem [shape: bf16[128,128], index: 2, kind: input, shape index: {}]
  %s3 = inlined_call_operand.vmem [shape: f32[128,128], index: 3, kind: output, shape index: {0}]
  %s4 = inlined_call_operand.vmem [shape: f32[1,8,128], index: 4, kind: output, shape index: {1}]
  %s5 = inlined_call_operand.vmem [shape: f32[1,8,128], index: 5, kind: output, shape index: {2}]
  %6 = xla_tuple %s3, %s4, %s5
  %s7 = sld [smem:[#allocation0]]
  $region38: #{unet_innermost_forward.2} parent=0
    _
  %s9 = ssub.s32 1, %s7
  %s10 = scalar_select 0, %s9, %s7
  // Predicated region
  $region2: #{unet_innermost_forward.2} parent=0 // pred_check
    _
  $region3: #{unet_innermost_forward.2} parent=0 // pred_check_branch
    %12 = sbr.rel (0) target = $region5
  $region4: #{unet_innermost_forward.2} parent=0 // pred_region
    _
  $region5: #{unet_innermost_forward.2} parent=0 // pred_fallthru
    _
  // Predicated region
  $region6: #{unet_innermost_forward.2} parent=0 // pred_check
    _
  $region7: #{unet_innermost_forward.2} parent=0 // pred_check_branch
    %14 = sbr.rel (0) target = $region9
  $region8: #{unet_innermost_forward.2} parent=0 // pred_region
    _
  $region9: #{unet_innermost_forward.2} parent=0 // pred_fallthru
    _
  // Predicated region
  $region10: #{unet_innermost_forward.2} parent=0 // pred_check
    _
  $region11: #{unet_innermost_forward.2} parent=0 // pred_check_branch
    %16 = sbr.rel (0) target = $region13
  $region12: #{unet_innermost_forward.2} parent=0 // pred_region
    _
  $region13: #{unet_innermost_forward.2} parent=0 // pred_fallthru
    _
  %v18 = vld [vmem:[%s0] sm:$0xf]
  %v19 = vld [vmem:[%s0 + $0x4] sm:$0xf]
  %v20 = vld [vmem:[%s0 + $0x8] sm:$0xf]
  %v21 = vld [vmem:[%s0 + $0xc] sm:$0xf]
  %v22 = vld [vmem:[%s0 + $0x10] sm:$0xf]
  %v23 = vld [vmem:[%s0 + $0x14] sm:$0xf]
  %v24 = vld [vmem:[%s0 + $0x18] sm:$0xf]
  %v25 = vld [vmem:[%s0 + $0x1c] sm:$0xf]
  %v26 = vld [vmem:[%s0 + $0x20] sm:$0xf]
  %v27 = vld [vmem:[%s0 + $0x24] sm:$0xf]
  %v28 = vld [vmem:[%s0 + $0x28] sm:$0xf]
  %v29 = vld [vmem:[%s0 + $0x2c] sm:$0xf]
  %v30 = vld [vmem:[%s0 + $0x30] sm:$0xf]
  %v31 = vld [vmem:[%s0 + $0x34] sm:$0xf]
  %v32 = vld [vmem:[%s0 + $0x38] sm:$0xf]
  %v33 = vld [vmem:[%s0 + $0x3c] sm:$0xf]
  %v34 = vld [vmem:[%s0 + $0x40] sm:$0xf]
  %v35 = vld [vmem:[%s0 + $0x44] sm:$0xf]
  %v36 = vld [vmem:[%s0 + $0x48] sm:$0xf]
  %v37 = vld [vmem:[%s0 + $0x4c] sm:$0xf]
  %v38 = vld [vmem:[%s0 + $0x50] sm:$0xf]
  %v39 = vld [vmem:[%s0 + $0x54] sm:$0xf]
  %v40 = vld [vmem:[%s0 + $0x58] sm:$0xf]
  %v41 = vld [vmem:[%s0 + $0x5c] sm:$0xf]
  %v42 = vld [vmem:[%s0 + $0x60] sm:$0xf]
  %v43 = vld [vmem:[%s0 + $0x64] sm:$0xf]
  %v44 = vld [vmem:[%s0 + $0x68] sm:$0xf]
  %v45 = vld [vmem:[%s0 + $0x6c] sm:$0xf]
  %v46 = vld [vmem:[%s0 + $0x70] sm:$0xf]
  %v47 = vld [vmem:[%s0 + $0x74] sm:$0xf]
  %v48 = vld [vmem:[%s0 + $0x78] sm:$0xf]
  %v49 = vld [vmem:[%s0 + $0x7c] sm:$0xf]
  %v50 = vld [vmem:[%s0 + $0x80] sm:$0xf]
  %v51 = vld [vmem:[%s0 + $0x84] sm:$0xf]
  %v52 = vld [vmem:[%s0 + $0x88] sm:$0xf]
  %v53 = vld [vmem:[%s0 + $0x8c] sm:$0xf]
  %v54 = vld [vmem:[%s0 + $0x90] sm:$0xf]
  %v55 = vld [vmem:[%s0 + $0x94] sm:$0xf]
  %v56 = vld [vmem:[%s0 + $0x98] sm:$0xf]
  %v57 = vld [vmem:[%s0 + $0x9c] sm:$0xf]
  %v58 = vld [vmem:[%s0 + $0xa0] sm:$0xf]
  %v59 = vld [vmem:[%s0 + $0xa4] sm:$0xf]
  %v60 = vld [vmem:[%s0 + $0xa8] sm:$0xf]
  %v61 = vld [vmem:[%s0 + $0xac] sm:$0xf]
  %v62 = vld [vmem:[%s0 + $0xb0] sm:$0xf]
  %v63 = vld [vmem:[%s0 + $0xb4] sm:$0xf]
  %v64 = vld [vmem:[%s0 + $0xb8] sm:$0xf]
  %v65 = vld [vmem:[%s0 + $0xbc] sm:$0xf]
  %v66 = vld [vmem:[%s0 + $0xc0] sm:$0xf]
  %v67 = vld [vmem:[%s0 + $0xc4] sm:$0xf]
  %v68 = vld [vmem:[%s0 + $0xc8] sm:$0xf]
  %v69 = vld [vmem:[%s0 + $0xcc] sm:$0xf]
  %v70 = vld [vmem:[%s0 + $0xd0] sm:$0xf]
  %v71 = vld [vmem:[%s0 + $0xd4] sm:$0xf]
  %v72 = vld [vmem:[%s0 + $0xd8] sm:$0xf]
  %v73 = vld [vmem:[%s0 + $0xdc] sm:$0xf]
  %v74 = vld [vmem:[%s0 + $0xe0] sm:$0xf]
  %v75 = vld [vmem:[%s0 + $0xe4] sm:$0xf]
  %v76 = vld [vmem:[%s0 + $0xe8] sm:$0xf]
  %v77 = vld [vmem:[%s0 + $0xec] sm:$0xf]
  %v78 = vld [vmem:[%s0 + $0xf0] sm:$0xf]
  %v79 = vld [vmem:[%s0 + $0xf4] sm:$0xf]
  %v80 = vld [vmem:[%s0 + $0xf8] sm:$0xf]
  %v81 = vld [vmem:[%s0 + $0xfc] sm:$0xf]
  %v82 = vld [vmem:[%s1] sm:$0xf]
  %v83 = vld [vmem:[%s1 + $0x4] sm:$0xf]
  %v84 = vld [vmem:[%s1 + $0x8] sm:$0xf]
  %v85 = vld [vmem:[%s1 + $0xc] sm:$0xf]
  %v86 = vld [vmem:[%s1 + $0x10] sm:$0xf]
  %v87 = vld [vmem:[%s1 + $0x14] sm:$0xf]
  %v88 = vld [vmem:[%s1 + $0x18] sm:$0xf]
  %v89 = vld [vmem:[%s1 + $0x1c] sm:$0xf]
  %v90 = vld [vmem:[%s1 + $0x20] sm:$0xf]
  %v91 = vld [vmem:[%s1 + $0x24] sm:$0xf]
  %v92 = vld [vmem:[%s1 + $0x28] sm:$0xf]
  %v93 = vld [vmem:[%s1 + $0x2c] sm:$0xf]
  %v94 = vld [vmem:[%s1 + $0x30] sm:$0xf]
  %v95 = vld [vmem:[%s1 + $0x34] sm:$0xf]
  %v96 = vld [vmem:[%s1 + $0x38] sm:$0xf]
  %v97 = vld [vmem:[%s1 + $0x3c] sm:$0xf]
  %v162 = vunpack.c.l.b16 %v18
  %v163 = vunpack.c.l.b16 %v19
  %v164 = vunpack.c.l.b16 %v20
  %v165 = vunpack.c.l.b16 %v21
  %v166 = vunpack.c.l.b16 %v22
  %v167 = vunpack.c.l.b16 %v23
  %v168 = vunpack.c.l.b16 %v24
  %v169 = vunpack.c.l.b16 %v25
  %v170 = vunpack.c.l.b16 %v26
  %v171 = vunpack.c.l.b16 %v27
  %v172 = vunpack.c.l.b16 %v28
  %v173 = vunpack.c.l.b16 %v29
  %v174 = vunpack.c.l.b16 %v30
  %v175 = vunpack.c.l.b16 %v31
  %v176 = vunpack.c.l.b16 %v32
  %v177 = vunpack.c.l.b16 %v33
  %v178 = vunpack.c.l.b16 %v34
  %v179 = vunpack.c.l.b16 %v35
  %v180 = vunpack.c.l.b16 %v36
  %v181 = vunpack.c.l.b16 %v37
  %v182 = vunpack.c.l.b16 %v38
  %v183 = vunpack.c.l.b16 %v39
  %v184 = vunpack.c.l.b16 %v40
  %v185 = vunpack.c.l.b16 %v41
  %v186 = vunpack.c.l.b16 %v42
  %v187 = vunpack.c.l.b16 %v43
  %v188 = vunpack.c.l.b16 %v44
  %v189 = vunpack.c.l.b16 %v45
  %v190 = vunpack.c.l.b16 %v46
  %v191 = vunpack.c.l.b16 %v47
  %v192 = vunpack.c.l.b16 %v48
  %v193 = vunpack.c.l.b16 %v49
  %v194 = vunpack.c.l.b16 %v50
  %v195 = vunpack.c.l.b16 %v51
  %v196 = vunpack.c.l.b16 %v52
  %v197 = vunpack.c.l.b16 %v53
  %v198 = vunpack.c.l.b16 %v54
  %v199 = vunpack.c.l.b16 %v55
  %v200 = vunpack.c.l.b16 %v56
  %v201 = vunpack.c.l.b16 %v57
  %v202 = vunpack.c.l.b16 %v58
  %v203 = vunpack.c.l.b16 %v59
  %v204 = vunpack.c.l.b16 %v60
  %v205 = vunpack.c.l.b16 %v61
  %v206 = vunpack.c.l.b16 %v62
  %v207 = vunpack.c.l.b16 %v63
  %v208 = vunpack.c.l.b16 %v64
  %v209 = vunpack.c.l.b16 %v65
  %v210 = vunpack.c.l.b16 %v66
  %v211 = vunpack.c.l.b16 %v67
  %v212 = vunpack.c.l.b16 %v68
  %v213 = vunpack.c.l.b16 %v69
  %v214 = vunpack.c.l.b16 %v70
  %v215 = vunpack.c.l.b16 %v71
  %v216 = vunpack.c.l.b16 %v72
  %v217 = vunpack.c.l.b16 %v73
  %v218 = vunpack.c.l.b16 %v74
  %v219 = vunpack.c.l.b16 %v75
  %v220 = vunpack.c.l.b16 %v76
  %v221 = vunpack.c.l.b16 %v77
  %v222 = vunpack.c.l.b16 %v78
  %v223 = vunpack.c.l.b16 %v79
  %v224 = vunpack.c.l.b16 %v80
  %v225 = vunpack.c.l.b16 %v81
  %v226 = vpack.c.b16 %v163, %v162
  %v227 = vpack.c.b16 %v165, %v164
  %v228 = vpack.c.b16 %v167, %v166
  %v229 = vpack.c.b16 %v169, %v168
  %v230 = vpack.c.b16 %v171, %v170
  %v231 = vpack.c.b16 %v173, %v172
  %v232 = vpack.c.b16 %v175, %v174
  %v233 = vpack.c.b16 %v177, %v176
  %v234 = vpack.c.b16 %v179, %v178
  %v235 = vpack.c.b16 %v181, %v180
  %v236 = vpack.c.b16 %v183, %v182
  %v237 = vpack.c.b16 %v185, %v184
  %v238 = vpack.c.b16 %v187, %v186
  %v239 = vpack.c.b16 %v189, %v188
  %v240 = vpack.c.b16 %v191, %v190
  %v241 = vpack.c.b16 %v193, %v192
  %v242 = vpack.c.b16 %v195, %v194
  %v243 = vpack.c.b16 %v197, %v196
  %v244 = vpack.c.b16 %v199, %v198
  %v245 = vpack.c.b16 %v201, %v200
  %v246 = vpack.c.b16 %v203, %v202
  %v247 = vpack.c.b16 %v205, %v204
  %v248 = vpack.c.b16 %v207, %v206
  %v249 = vpack.c.b16 %v209, %v208
  %v250 = vpack.c.b16 %v211, %v210
  %v251 = vpack.c.b16 %v213, %v212
  %v252 = vpack.c.b16 %v215, %v214
  %v253 = vpack.c.b16 %v217, %v216
  %v254 = vpack.c.b16 %v219, %v218
  %v255 = vpack.c.b16 %v221, %v220
  %v256 = vpack.c.b16 %v223, %v222
  %v257 = vpack.c.b16 %v225, %v224
  %v306 = vunpack.c.l.b16 %v82
  %v307 = vunpack.c.l.b16 %v83
  %v308 = vunpack.c.l.b16 %v84
  %v309 = vunpack.c.l.b16 %v85
  %v310 = vunpack.c.l.b16 %v86
  %v311 = vunpack.c.l.b16 %v87
  %v312 = vunpack.c.l.b16 %v88
  %v313 = vunpack.c.l.b16 %v89
  %v314 = vunpack.c.l.b16 %v90
  %v315 = vunpack.c.l.b16 %v91
  %v316 = vunpack.c.l.b16 %v92
  %v317 = vunpack.c.l.b16 %v93
  %v318 = vunpack.c.l.b16 %v94
  %v319 = vunpack.c.l.b16 %v95
  %v320 = vunpack.c.l.b16 %v96
  %v321 = vunpack.c.l.b16 %v97
  %v322 = vpack.c.b16 %v307, %v306
  %v323 = vpack.c.b16 %v309, %v308
  %v324 = vpack.c.b16 %v311, %v310
  %v325 = vpack.c.b16 %v313, %v312
  %v326 = vpack.c.b16 %v315, %v314
  %v327 = vpack.c.b16 %v317, %v316
  %v328 = vpack.c.b16 %v319, %v318
  %v329 = vpack.c.b16 %v321, %v320
  %338 = vmatprep.subr.bf16.mxu0 0
  %339 = vmatpush1.bf16.msra.mxu0 %v322
  %340 = vmatprep.subr.bf16.mxu0 0
  %341 = vmatpush1.bf16.msra.mxu0 %v323
  %342 = vmatprep.subr.bf16.mxu0 0
  %343 = vmatpush1.bf16.msra.mxu0 %v324
  %344 = vmatprep.subr.bf16.mxu0 0
  %345 = vmatpush1.bf16.msra.mxu0 %v325
  %346 = vmatprep.subr.bf16.mxu0 0
  %347 = vmatpush1.bf16.msra.mxu0 %v326
  %348 = vmatprep.subr.bf16.mxu0 0
  %349 = vmatpush1.bf16.msra.mxu0 %v327
  %350 = vmatprep.subr.bf16.mxu0 0
  %351 = vmatpush1.bf16.msra.mxu0 %v328
  %352 = vmatprep.subr.bf16.mxu0 0
  %353 = vmatpush1.bf16.msra.mxu0 %v329
  %354 = vmatprep.subr.bf16.mxu0 0
  %355 = vmatpush1.bf16.msra.mxu0 0
  %356 = vmatprep.subr.bf16.mxu0 0
  %357 = vmatpush1.bf16.msra.mxu0 0
  %358 = vmatprep.subr.bf16.mxu0 0
  %359 = vmatpush1.bf16.msra.mxu0 0
  %360 = vmatprep.subr.bf16.mxu0 0
  %361 = vmatpush1.bf16.msra.mxu0 0
  %362 = vmatprep.subr.bf16.mxu0 0
  %363 = vmatpush1.bf16.msra.mxu0 0
  %364 = vmatprep.subr.bf16.mxu0 0
  %365 = vmatpush1.bf16.msra.mxu0 0
  %366 = vmatprep.subr.bf16.mxu0 0
  %367 = vmatpush1.bf16.msra.mxu0 0
  %368 = vmatprep.subr.bf16.mxu0 0
  %369 = vmatpush1.bf16.msra.mxu0 0
  %370 = vmatprep.mubr.bf16.mxu0 0
  %371 = vmatmul.mubr.bf16.gmra.mrb[0].mxu0 %v226
  %v372 = vpop.f32.mrb[0].mxu0
  %v373 = vadd.f32 0.0, %v372
  %v374 = vpop.f32.mrb[0].mxu0
  %v375 = vpop.f32.mrb[0].mxu0
  %v376 = vadd.f32 0.0, %v375
  %v377 = vpop.f32.mrb[0].mxu0
  %378 = vmatprep.mubr.bf16.mxu0 0
  %379 = vmatmul.mubr.bf16.gmra.mrb[0].mxu0 %v227
  %v380 = vpop.f32.mrb[0].mxu0
  %v381 = vadd.f32 0.0, %v380
  %v382 = vpop.f32.mrb[0].mxu0
  %v383 = vpop.f32.mrb[0].mxu0
  %v384 = vadd.f32 0.0, %v383
  %v385 = vpop.f32.mrb[0].mxu0
  %386 = vmatprep.mubr.bf16.mxu0 0
  %387 = vmatmul.mubr.bf16.gmra.mrb[0].mxu0 %v228
  %v388 = vpop.f32.mrb[0].mxu0
  %v389 = vadd.f32 0.0, %v388
  %v390 = vpop.f32.mrb[0].mxu0
  %v391 = vpop.f32.mrb[0].mxu0
  %v392 = vadd.f32 0.0, %v391
  %v393 = vpop.f32.mrb[0].mxu0
  %394 = vmatprep.mubr.bf16.mxu0 0
  %395 = vmatmul.mubr.bf16.gmra.mrb[0].mxu0 %v229
  %v396 = vpop.f32.mrb[0].mxu0
  %v397 = vadd.f32 0.0, %v396
  %v398 = vpop.f32.mrb[0].mxu0
  %v399 = vpop.f32.mrb[0].mxu0
  %v400 = vadd.f32 0.0, %v399
  %v401 = vpop.f32.mrb[0].mxu0
  %402 = vmatprep.mubr.bf16.mxu0 0
  %403 = vmatmul.mubr.bf16.gmra.mrb[0].mxu0 %v230
  %v404 = vpop.f32.mrb[0].mxu0
  %v405 = vadd.f32 0.0, %v404
  %v406 = vpop.f32.mrb[0].mxu0
  %v407 = vpop.f32.mrb[0].mxu0
  %v408 = vadd.f32 0.0, %v407
  %v409 = vpop.f32.mrb[0].mxu0
  %410 = vmatprep.mubr.bf16.mxu0 0
  %411 = vmatmul.mubr.bf16.gmra.mrb[0].mxu0 %v231
  %v412 = vpop.f32.mrb[0].mxu0
  %v413 = vadd.f32 0.0, %v412
  %v414 = vpop.f32.mrb[0].mxu0
  %v415 = vpop.f32.mrb[0].mxu0
  %v416 = vadd.f32 0.0, %v415
  %v417 = vpop.f32.mrb[0].mxu0
  %418 = vmatprep.mubr.bf16.mxu0 0
  %419 = vmatmul.mubr.bf16.gmra.mrb[0].mxu0 %v232
  %v420 = vpop.f32.mrb[0].mxu0
  %v421 = vadd.f32 0.0, %v420
  %v422 = vpop.f32.mrb[0].mxu0
  %v423 = vpop.f32.mrb[0].mxu0
  %v424 = vadd.f32 0.0, %v423
  %v425 = vpop.f32.mrb[0].mxu0
  %426 = vmatprep.mubr.bf16.mxu0 0
  %427 = vmatmul.mubr.bf16.gmra.mrb[0].mxu0 %v233
  %v428 = vpop.f32.mrb[0].mxu0
  %v429 = vadd.f32 0.0, %v428
  %v430 = vpop.f32.mrb[0].mxu0
  %v431 = vpop.f32.mrb[0].mxu0
  %v432 = vadd.f32 0.0, %v431
  %v433 = vpop.f32.mrb[0].mxu0
  %434 = vmatprep.mubr.bf16.mxu0 0
  %435 = vmatmul.mubr.bf16.gmra.mrb[0].mxu0 %v234
  %v436 = vpop.f32.mrb[0].mxu0
  %v437 = vadd.f32 0.0, %v436
  %v438 = vpop.f32.mrb[0].mxu0
  %v439 = vpop.f32.mrb[0].mxu0
  %v440 = vadd.f32 0.0, %v439
  %v441 = vpop.f32.mrb[0].mxu0
  %442 = vmatprep.mubr.bf16.mxu0 0
  %443 = vmatmul.mubr.bf16.gmra.mrb[0].mxu0 %v235
  %v444 = vpop.f32.mrb[0].mxu0
  %v445 = vadd.f32 0.0, %v444
  %v446 = vpop.f32.mrb[0].mxu0
  %v447 = vpop.f32.mrb[0].mxu0
  %v448 = vadd.f32 0.0, %v447
  %v449 = vpop.f32.mrb[0].mxu0
  %450 = vmatprep.mubr.bf16.mxu0 0
  %451 = vmatmul.mubr.bf16.gmra.mrb[0].mxu0 %v236
  %v452 = vpop.f32.mrb[0].mxu0
  %v453 = vadd.f32 0.0, %v452
  %v454 = vpop.f32.mrb[0].mxu0
  %v455 = vpop.f32.mrb[0].mxu0
  %v456 = vadd.f32 0.0, %v455
  %v457 = vpop.f32.mrb[0].mxu0
  %458 = vmatprep.mubr.bf16.mxu0 0
  %459 = vmatmul.mubr.bf16.gmra.mrb[0].mxu0 %v237
  %v460 = vpop.f32.mrb[0].mxu0
  %v461 = vadd.f32 0.0, %v460
  %v462 = vpop.f32.mrb[0].mxu0
  %v463 = vpop.f32.mrb[0].mxu0
  %v464 = vadd.f32 0.0, %v463
  %v465 = vpop.f32.mrb[0].mxu0
  %466 = vmatprep.mubr.bf16.mxu0 0
  %467 = vmatmul.mubr.bf16.gmra.mrb[0].mxu0 %v238
  %v468 = vpop.f32.mrb[0].mxu0
  %v469 = vadd.f32 0.0, %v468
  %v470 = vpop.f32.mrb[0].mxu0
  %v471 = vpop.f32.mrb[0].mxu0
  %v472 = vadd.f32 0.0, %v471
  %v473 = vpop.f32.mrb[0].mxu0
  %474 = vmatprep.mubr.bf16.mxu0 0
  %475 = vmatmul.mubr.bf16.gmra.mrb[0].mxu0 %v239
  %v476 = vpop.f32.mrb[0].mxu0
  %v477 = vadd.f32 0.0, %v476
  %v478 = vpop.f32.mrb[0].mxu0
  %v479 = vpop.f32.mrb[0].mxu0
  %v480 = vadd.f32 0.0, %v479
  %v481 = vpop.f32.mrb[0].mxu0
  %482 = vmatprep.mubr.bf16.mxu0 0
  %483 = vmatmul.mubr.bf16.gmra.mrb[0].mxu0 %v240
  %v484 = vpop.f32.mrb[0].mxu0
  %v485 = vadd.f32 0.0, %v484
  %v486 = vpop.f32.mrb[0].mxu0
  %v487 = vpop.f32.mrb[0].mxu0
  %v488 = vadd.f32 0.0, %v487
  %v489 = vpop.f32.mrb[0].mxu0
  %490 = vmatprep.mubr.bf16.mxu0 0
  %491 = vmatmul.mubr.bf16.gmra.mrb[0].mxu0 %v241
  %v492 = vpop.f32.mrb[0].mxu0
  %v493 = vadd.f32 0.0, %v492
  %v494 = vpop.f32.mrb[0].mxu0
  %v495 = vpop.f32.mrb[0].mxu0
  %v496 = vadd.f32 0.0, %v495
  %v497 = vpop.f32.mrb[0].mxu0
  %498 = vmatprep.mubr.bf16.mxu0 0
  %499 = vmatmul.mubr.bf16.gmra.mrb[0].mxu0 %v242
  %v500 = vpop.f32.mrb[0].mxu0
  %v501 = vadd.f32 0.0, %v500
  %v502 = vpop.f32.mrb[0].mxu0
  %v503 = vpop.f32.mrb[0].mxu0
  %v504 = vadd.f32 0.0, %v503
  %v505 = vpop.f32.mrb[0].mxu0
  %506 = vmatprep.mubr.bf16.mxu0 0
  %507 = vmatmul.mubr.bf16.gmra.mrb[0].mxu0 %v243
  %v508 = vpop.f32.mrb[0].mxu0
  %v509 = vadd.f32 0.0, %v508
  %v510 = vpop.f32.mrb[0].mxu0
  %v511 = vpop.f32.mrb[0].mxu0
  %v512 = vadd.f32 0.0, %v511
  %v513 = vpop.f32.mrb[0].mxu0
  %514 = vmatprep.mubr.bf16.mxu0 0
  %515 = vmatmul.mubr.bf16.gmra.mrb[0].mxu0 %v244
  %v516 = vpop.f32.mrb[0].mxu0
  %v517 = vadd.f32 0.0, %v516
  %v518 = vpop.f32.mrb[0].mxu0
  %v519 = vpop.f32.mrb[0].mxu0
  %v520 = vadd.f32 0.0, %v519
  %v521 = vpop.f32.mrb[0].mxu0
  %522 = vmatprep.mubr.bf16.mxu0 0
  %523 = vmatmul.mubr.bf16.gmra.mrb[0].mxu0 %v245
  %v524 = vpop.f32.mrb[0].mxu0
  %v525 = vadd.f32 0.0, %v524
  %v526 = vpop.f32.mrb[0].mxu0
  %v527 = vpop.f32.mrb[0].mxu0
  %v528 = vadd.f32 0.0, %v527
  %v529 = vpop.f32.mrb[0].mxu0
  %530 = vmatprep.mubr.bf16.mxu0 0
  %531 = vmatmul.mubr.bf16.gmra.mrb[0].mxu0 %v246
  %v532 = vpop.f32.mrb[0].mxu0
  %v533 = vadd.f32 0.0, %v532
  %v534 = vpop.f32.mrb[0].mxu0
  %v535 = vpop.f32.mrb[0].mxu0
  %v536 = vadd.f32 0.0, %v535
  %v537 = vpop.f32.mrb[0].mxu0
  %538 = vmatprep.mubr.bf16.mxu0 0
  %539 = vmatmul.mubr.bf16.gmra.mrb[0].mxu0 %v247
  %v540 = vpop.f32.mrb[0].mxu0
  %v541 = vadd.f32 0.0, %v540
  %v542 = vpop.f32.mrb[0].mxu0
  %v543 = vpop.f32.mrb[0].mxu0
  %v544 = vadd.f32 0.0, %v543
  %v545 = vpop.f32.mrb[0].mxu0
  %546 = vmatprep.mubr.bf16.mxu0 0
  %547 = vmatmul.mubr.bf16.gmra.mrb[0].mxu0 %v248
  %v548 = vpop.f32.mrb[0].mxu0
  %v549 = vadd.f32 0.0, %v548
  %v550 = vpop.f32.mrb[0].mxu0
  %v551 = vpop.f32.mrb[0].mxu0
  %v552 = vadd.f32 0.0, %v551
  %v553 = vpop.f32.mrb[0].mxu0
  %554 = vmatprep.mubr.bf16.mxu0 0
  %555 = vmatmul.mubr.bf16.gmra.mrb[0].mxu0 %v249
  %v556 = vpop.f32.mrb[0].mxu0
  %v557 = vadd.f32 0.0, %v556
  %v558 = vpop.f32.mrb[0].mxu0
  %v559 = vpop.f32.mrb[0].mxu0
  %v560 = vadd.f32 0.0, %v559
  %v561 = vpop.f32.mrb[0].mxu0
  %562 = vmatprep.mubr.bf16.mxu0 0
  %563 = vmatmul.mubr.bf16.gmra.mrb[0].mxu0 %v250
  %v564 = vpop.f32.mrb[0].mxu0
  %v565 = vadd.f32 0.0, %v564
  %v566 = vpop.f32.mrb[0].mxu0
  %v567 = vpop.f32.mrb[0].mxu0
  %v568 = vadd.f32 0.0, %v567
  %v569 = vpop.f32.mrb[0].mxu0
  %570 = vmatprep.mubr.bf16.mxu0 0
  %571 = vmatmul.mubr.bf16.gmra.mrb[0].mxu0 %v251
  %v572 = vpop.f32.mrb[0].mxu0
  %v573 = vadd.f32 0.0, %v572
  %v574 = vpop.f32.mrb[0].mxu0
  %v575 = vpop.f32.mrb[0].mxu0
  %v576 = vadd.f32 0.0, %v575
  %v577 = vpop.f32.mrb[0].mxu0
  %578 = vmatprep.mubr.bf16.mxu0 0
  %579 = vmatmul.mubr.bf16.gmra.mrb[0].mxu0 %v252
  %v580 = vpop.f32.mrb[0].mxu0
  %v581 = vadd.f32 0.0, %v580
  %v582 = vpop.f32.mrb[0].mxu0
  %v583 = vpop.f32.mrb[0].mxu0
  %v584 = vadd.f32 0.0, %v583
  %v585 = vpop.f32.mrb[0].mxu0
  %586 = vmatprep.mubr.bf16.mxu0 0
  %587 = vmatmul.mubr.bf16.gmra.mrb[0].mxu0 %v253
  %v588 = vpop.f32.mrb[0].mxu0
  %v589 = vadd.f32 0.0, %v588
  %v590 = vpop.f32.mrb[0].mxu0
  %v591 = vpop.f32.mrb[0].mxu0
  %v592 = vadd.f32 0.0, %v591
  %v593 = vpop.f32.mrb[0].mxu0
  %594 = vmatprep.mubr.bf16.mxu0 0
  %595 = vmatmul.mubr.bf16.gmra.mrb[0].mxu0 %v254
  %v596 = vpop.f32.mrb[0].mxu0
  %v597 = vadd.f32 0.0, %v596
  %v598 = vpop.f32.mrb[0].mxu0
  %v599 = vpop.f32.mrb[0].mxu0
  %v600 = vadd.f32 0.0, %v599
  %v601 = vpop.f32.mrb[0].mxu0
  %602 = vmatprep.mubr.bf16.mxu0 0
  %603 = vmatmul.mubr.bf16.gmra.mrb[0].mxu0 %v255
  %v604 = vpop.f32.mrb[0].mxu0
  %v605 = vadd.f32 0.0, %v604
  %v606 = vpop.f32.mrb[0].mxu0
  %v607 = vpop.f32.mrb[0].mxu0
  %v608 = vadd.f32 0.0, %v607
  %v609 = vpop.f32.mrb[0].mxu0
  %610 = vmatprep.mubr.bf16.mxu0 0
  %611 = vmatmul.mubr.bf16.gmra.mrb[0].mxu0 %v256
  %v612 = vpop.f32.mrb[0].mxu0
  %v613 = vadd.f32 0.0, %v612
  %v614 = vpop.f32.mrb[0].mxu0
  %v615 = vpop.f32.mrb[0].mxu0
  %v616 = vadd.f32 0.0, %v615
  %v617 = vpop.f32.mrb[0].mxu0
  %618 = vmatprep.mubr.bf16.mxu0 0
  %619 = vmatmul.mubr.bf16.gmra.mrb[0].mxu0 %v257
  %v620 = vpop.f32.mrb[0].mxu0
  %v621 = vadd.f32 0.0, %v620
  %v622 = vpop.f32.mrb[0].mxu0
  %v623 = vpop.f32.mrb[0].mxu0
  %v624 = vadd.f32 0.0, %v623
  %v625 = vpop.f32.mrb[0].mxu0
  %626 = vdwg.mxu0
  %v627 = vmax.f32 %v373, %v437
  %v628 = vmax.f32 %v376, %v440
  %v629 = vmax.f32 %v381, %v445
  %v630 = vmax.f32 %v384, %v448
  %v631 = vmax.f32 %v389, %v453
  %v632 = vmax.f32 %v392, %v456
  %v633 = vmax.f32 %v397, %v461
  %v634 = vmax.f32 %v400, %v464
  %v635 = vmax.f32 %v405, %v469
  %v636 = vmax.f32 %v408, %v472
  %v637 = vmax.f32 %v413, %v477
  %v638 = vmax.f32 %v416, %v480
  %v639 = vmax.f32 %v421, %v485
  %v640 = vmax.f32 %v424, %v488
  %v641 = vmax.f32 %v429, %v493
  %v642 = vmax.f32 %v432, %v496
  %v643 = vmax.f32 %v501, %v565
  %v644 = vmax.f32 %v504, %v568
  %v645 = vmax.f32 %v509, %v573
  %v646 = vmax.f32 %v512, %v576
  %v647 = vmax.f32 %v517, %v581
  %v648 = vmax.f32 %v520, %v584
  %v649 = vmax.f32 %v525, %v589
  %v650 = vmax.f32 %v528, %v592
  %v651 = vmax.f32 %v533, %v597
  %v652 = vmax.f32 %v536, %v600
  %v653 = vmax.f32 %v541, %v605
  %v654 = vmax.f32 %v544, %v608
  %v655 = vmax.f32 %v549, %v613
  %v656 = vmax.f32 %v552, %v616
  %v657 = vmax.f32 %v557, %v621
  %v658 = vmax.f32 %v560, %v624
  %v659 = vmax.f32 %v627, %v643
  %v660 = vmax.f32 %v628, %v644
  %v661 = vmax.f32 %v629, %v645
  %v662 = vmax.f32 %v630, %v646
  %v663 = vmax.f32 %v631, %v647
  %v664 = vmax.f32 %v632, %v648
  %v665 = vmax.f32 %v633, %v649
  %v666 = vmax.f32 %v634, %v650
  %v667 = vmax.f32 %v635, %v651
  %v668 = vmax.f32 %v636, %v652
  %v669 = vmax.f32 %v637, %v653
  %v670 = vmax.f32 %v638, %v654
  %v671 = vmax.f32 %v639, %v655
  %v672 = vmax.f32 %v640, %v656
  %v673 = vmax.f32 %v641, %v657
  %v674 = vmax.f32 %v642, %v658
  %vm675 = vcmp.gt.f32.partialorder %v659, 0.0
  %vm676 = vcmp.gt.f32.partialorder %v660, 0.0
  %vm677 = vcmp.gt.f32.partialorder %v661, 0.0
  %vm678 = vcmp.gt.f32.partialorder %v662, 0.0
  %vm679 = vcmp.gt.f32.partialorder %v663, 0.0
  %vm680 = vcmp.gt.f32.partialorder %v664, 0.0
  %vm681 = vcmp.gt.f32.partialorder %v665, 0.0
  %vm682 = vcmp.gt.f32.partialorder %v666, 0.0
  %vm683 = vcmp.gt.f32.partialorder %v667, 0.0
  %vm684 = vcmp.gt.f32.partialorder %v668, 0.0
  %vm685 = vcmp.gt.f32.partialorder %v669, 0.0
  %vm686 = vcmp.gt.f32.partialorder %v670, 0.0
  %vm687 = vcmp.gt.f32.partialorder %v671, 0.0
  %vm688 = vcmp.gt.f32.partialorder %v672, 0.0
  %vm689 = vcmp.gt.f32.partialorder %v673, 0.0
  %vm690 = vcmp.gt.f32.partialorder %v674, 0.0
  %v691 = vmul.f32 %v659, 0.2
  %v692 = vmul.f32 %v660, 0.2
  %v693 = vmul.f32 %v661, 0.2
  %v694 = vmul.f32 %v662, 0.2
  %v695 = vmul.f32 %v663, 0.2
  %v696 = vmul.f32 %v664, 0.2
  %v697 = vmul.f32 %v665, 0.2
  %v698 = vmul.f32 %v666, 0.2
  %v699 = vmul.f32 %v667, 0.2
  %v700 = vmul.f32 %v668, 0.2
  %v701 = vmul.f32 %v669, 0.2
  %v702 = vmul.f32 %v670, 0.2
  %v703 = vmul.f32 %v671, 0.2
  %v704 = vmul.f32 %v672, 0.2
  %v705 = vmul.f32 %v673, 0.2
  %v706 = vmul.f32 %v674, 0.2
  %v707 = vsel %vm675, %v659, %v691
  %v708 = vsel %vm676, %v660, %v692
  %v709 = vsel %vm677, %v661, %v693
  %v710 = vsel %vm678, %v662, %v694
  %v711 = vsel %vm679, %v663, %v695
  %v712 = vsel %vm680, %v664, %v696
  %v713 = vsel %vm681, %v665, %v697
  %v714 = vsel %vm682, %v666, %v698
  %v715 = vsel %vm683, %v667, %v699
  %v716 = vsel %vm684, %v668, %v700
  %v717 = vsel %vm685, %v669, %v701
  %v718 = vsel %vm686, %v670, %v702
  %v719 = vsel %vm687, %v671, %v703
  %v720 = vsel %vm688, %v672, %v704
  %v721 = vsel %vm689, %v673, %v705
  %v722 = vsel %vm690, %v674, %v706
  %v723 = vpack.c.bf16 %v708, %v707
  %v724 = vpack.c.bf16 %v710, %v709
  %v725 = vpack.c.bf16 %v712, %v711
  %v726 = vpack.c.bf16 %v714, %v713
  %v727 = vpack.c.bf16 %v716, %v715
  %v728 = vpack.c.bf16 %v718, %v717
  %v729 = vpack.c.bf16 %v720, %v719
  %v730 = vpack.c.bf16 %v722, %v721
  %v731 = vld [vmem:[%s2] sm:$0xf]
  %v732 = vld [vmem:[%s2 + $0x4] sm:$0xf]
  %v733 = vld [vmem:[%s2 + $0x8] sm:$0xf]
  %v734 = vld [vmem:[%s2 + $0xc] sm:$0xf]
  %v735 = vld [vmem:[%s2 + $0x10] sm:$0xf]
  %v736 = vld [vmem:[%s2 + $0x14] sm:$0xf]
  %v737 = vld [vmem:[%s2 + $0x18] sm:$0xf]
  %v738 = vld [vmem:[%s2 + $0x1c] sm:$0xf]
  %v739 = vld [vmem:[%s2 + $0x20] sm:$0xf]
  %v740 = vld [vmem:[%s2 + $0x24] sm:$0xf]
  %v741 = vld [vmem:[%s2 + $0x28] sm:$0xf]
  %v742 = vld [vmem:[%s2 + $0x2c] sm:$0xf]
  %v743 = vld [vmem:[%s2 + $0x30] sm:$0xf]
  %v744 = vld [vmem:[%s2 + $0x34] sm:$0xf]
  %v745 = vld [vmem:[%s2 + $0x38] sm:$0xf]
  %v746 = vld [vmem:[%s2 + $0x3c] sm:$0xf]
  %v763 = vunpack.c.l.b16 %v731
  %v764 = vunpack.c.l.b16 %v732
  %v765 = vunpack.c.l.b16 %v733
  %v766 = vunpack.c.l.b16 %v734
  %v767 = vunpack.c.l.b16 %v735
  %v768 = vunpack.c.l.b16 %v736
  %v769 = vunpack.c.l.b16 %v737
  %v770 = vunpack.c.l.b16 %v738
  %v771 = vunpack.c.l.b16 %v739
  %v772 = vunpack.c.l.b16 %v740
  %v773 = vunpack.c.l.b16 %v741
  %v774 = vunpack.c.l.b16 %v742
  %v775 = vunpack.c.l.b16 %v743
  %v776 = vunpack.c.l.b16 %v744
  %v777 = vunpack.c.l.b16 %v745
  %v778 = vunpack.c.l.b16 %v746
  %v779 = vpack.c.b16 %v764, %v763
  %v780 = vpack.c.b16 %v766, %v765
  %v781 = vpack.c.b16 %v768, %v767
  %v782 = vpack.c.b16 %v770, %v769
  %v783 = vpack.c.b16 %v772, %v771
  %v784 = vpack.c.b16 %v774, %v773
  %v785 = vpack.c.b16 %v776, %v775
  %v786 = vpack.c.b16 %v778, %v777
  %795 = vmatprep.subr.bf16.mxu0 0
  %796 = vmatpush1.bf16.msra.mxu0 %v779
  %797 = vmatprep.subr.bf16.mxu0 0
  %798 = vmatpush1.bf16.msra.mxu0 %v780
  %799 = vmatprep.subr.bf16.mxu0 0
  %800 = vmatpush1.bf16.msra.mxu0 %v781
  %801 = vmatprep.subr.bf16.mxu0 0
  %802 = vmatpush1.bf16.msra.mxu0 %v782
  %803 = vmatprep.subr.bf16.mxu0 0
  %804 = vmatpush1.bf16.msra.mxu0 %v783
  %805 = vmatprep.subr.bf16.mxu0 0
  %806 = vmatpush1.bf16.msra.mxu0 %v784
  %807 = vmatprep.subr.bf16.mxu0 0
  %808 = vmatpush1.bf16.msra.mxu0 %v785
  %809 = vmatprep.subr.bf16.mxu0 0
  %810 = vmatpush1.bf16.msra.mxu0 %v786
  %811 = vmatprep.subr.bf16.mxu0 0
  %812 = vmatpush1.bf16.msra.mxu0 0
  %813 = vmatprep.subr.bf16.mxu0 0
  %814 = vmatpush1.bf16.msra.mxu0 0
  %815 = vmatprep.subr.bf16.mxu0 0
  %816 = vmatpush1.bf16.msra.mxu0 0
  %817 = vmatprep.subr.bf16.mxu0 0
  %818 = vmatpush1.bf16.msra.mxu0 0
  %819 = vmatprep.subr.bf16.mxu0 0
  %820 = vmatpush1.bf16.msra.mxu0 0
  %821 = vmatprep.subr.bf16.mxu0 0
  %822 = vmatpush1.bf16.msra.mxu0 0
  %823 = vmatprep.subr.bf16.mxu0 0
  %824 = vmatpush1.bf16.msra.mxu0 0
  %825 = vmatprep.subr.bf16.mxu0 0
  %826 = vmatpush1.bf16.msra.mxu0 0
  %827 = vmatprep.mubr.bf16.mxu0 0
  %828 = vmatmul.mubr.bf16.gmra.mrb[0].mxu0 %v723
  %v829 = vpop.f32.mrb[0].mxu0
  %v830 = vadd.f32 0.0, %v829
  %v831 = vpop.f32.mrb[0].mxu0
  %v832 = vpop.f32.mrb[0].mxu0
  %v833 = vadd.f32 0.0, %v832
  %v834 = vpop.f32.mrb[0].mxu0
  %835 = vmatprep.mubr.bf16.mxu0 0
  %836 = vmatmul.mubr.bf16.gmra.mrb[0].mxu0 %v724
  %v837 = vpop.f32.mrb[0].mxu0
  %v838 = vadd.f32 0.0, %v837
  %v839 = vpop.f32.mrb[0].mxu0
  %v840 = vpop.f32.mrb[0].mxu0
  %v841 = vadd.f32 0.0, %v840
  %v842 = vpop.f32.mrb[0].mxu0
  %843 = vmatprep.mubr.bf16.mxu0 0
  %844 = vmatmul.mubr.bf16.gmra.mrb[0].mxu0 %v725
  %v845 = vpop.f32.mrb[0].mxu0
  %v846 = vadd.f32 0.0, %v845
  %v847 = vpop.f32.mrb[0].mxu0
  %v848 = vpop.f32.mrb[0].mxu0
  %v849 = vadd.f32 0.0, %v848
  %v850 = vpop.f32.mrb[0].mxu0
  %851 = vmatprep.mubr.bf16.mxu0 0
  %852 = vmatmul.mubr.bf16.gmra.mrb[0].mxu0 %v726
  %v853 = vpop.f32.mrb[0].mxu0
  %v854 = vadd.f32 0.0, %v853
  %v855 = vpop.f32.mrb[0].mxu0
  %v856 = vpop.f32.mrb[0].mxu0
  %v857 = vadd.f32 0.0, %v856
  %v858 = vpop.f32.mrb[0].mxu0
  %859 = vmatprep.mubr.bf16.mxu0 0
  %860 = vmatmul.mubr.bf16.gmra.mrb[0].mxu0 %v727
  %v861 = vpop.f32.mrb[0].mxu0
  %v862 = vadd.f32 0.0, %v861
  %v863 = vpop.f32.mrb[0].mxu0
  %v864 = vpop.f32.mrb[0].mxu0
  %v865 = vadd.f32 0.0, %v864
  %v866 = vpop.f32.mrb[0].mxu0
  %867 = vmatprep.mubr.bf16.mxu0 0
  %868 = vmatmul.mubr.bf16.gmra.mrb[0].mxu0 %v728
  %v869 = vpop.f32.mrb[0].mxu0
  %v870 = vadd.f32 0.0, %v869
  %v871 = vpop.f32.mrb[0].mxu0
  %v872 = vpop.f32.mrb[0].mxu0
  %v873 = vadd.f32 0.0, %v872
  %v874 = vpop.f32.mrb[0].mxu0
  %875 = vmatprep.mubr.bf16.mxu0 0
  %876 = vmatmul.mubr.bf16.gmra.mrb[0].mxu0 %v729
  %v877 = vpop.f32.mrb[0].mxu0
  %v878 = vadd.f32 0.0, %v877
  %v879 = vpop.f32.mrb[0].mxu0
  %v880 = vpop.f32.mrb[0].mxu0
  %v881 = vadd.f32 0.0, %v880
  %v882 = vpop.f32.mrb[0].mxu0
  %883 = vmatprep.mubr.bf16.mxu0 0
  %884 = vmatmul.mubr.bf16.gmra.mrb[0].mxu0 %v730
  %v885 = vpop.f32.mrb[0].mxu0
  %v886 = vadd.f32 0.0, %v885
  %v887 = vpop.f32.mrb[0].mxu0
  %v888 = vpop.f32.mrb[0].mxu0
  %v889 = vadd.f32 0.0, %v888
  %v890 = vpop.f32.mrb[0].mxu0
  %891 = vdwg.mxu0
  %892 = vst [vmem:[%s3] sm:$0xff] %v830
  %893 = vst [vmem:[%s3 + $0x8] sm:$0xff] %v833
  %894 = vst [vmem:[%s3 + $0x10] sm:$0xff] %v838
  %895 = vst [vmem:[%s3 + $0x18] sm:$0xff] %v841
  %896 = vst [vmem:[%s3 + $0x20] sm:$0xff] %v846
  %897 = vst [vmem:[%s3 + $0x28] sm:$0xff] %v849
  %898 = vst [vmem:[%s3 + $0x30] sm:$0xff] %v854
  %899 = vst [vmem:[%s3 + $0x38] sm:$0xff] %v857
  %900 = vst [vmem:[%s3 + $0x40] sm:$0xff] %v862
  %901 = vst [vmem:[%s3 + $0x48] sm:$0xff] %v865
  %902 = vst [vmem:[%s3 + $0x50] sm:$0xff] %v870
  %903 = vst [vmem:[%s3 + $0x58] sm:$0xff] %v873
  %904 = vst [vmem:[%s3 + $0x60] sm:$0xff] %v878
  %905 = vst [vmem:[%s3 + $0x68] sm:$0xff] %v881
  %906 = vst [vmem:[%s3 + $0x70] sm:$0xff] %v886
  %907 = vst [vmem:[%s3 + $0x78] sm:$0xff] %v889
  %v908 = vadd.f32 %v830, %v833
  %v909 = vadd.f32 %v908, %v838
  %v910 = vadd.f32 %v909, %v841
  %v911 = vadd.f32 %v910, %v846
  %v912 = vadd.f32 %v911, %v849
  %v913 = vadd.f32 %v912, %v854
  %v914 = vadd.f32 %v913, %v857
  %v915 = vadd.f32 %v914, %v862
  %v916 = vadd.f32 %v915, %v865
  %v917 = vadd.f32 %v916, %v870
  %v918 = vadd.f32 %v917, %v873
  %v919 = vadd.f32 %v918, %v878
  %v920 = vadd.f32 %v919, %v881
  %v921 = vadd.f32 %v920, %v886
  %v922 = vadd.f32 %v921, %v889
  %v923 = vrot.slane %v922, 4
  %v924 = vadd.f32 %v922, %v923
  %v925 = vrot.slane %v924, 2
  %v926 = vadd.f32 %v924, %v925
  %v927 = vrot.slane %v926, 1
  %v928 = vadd.f32 %v926, %v927
  %v929 = vmul.f32 %v830, %v830
  %v930 = vmul.f32 %v833, %v833
  %v931 = vmul.f32 %v838, %v838
  %v932 = vmul.f32 %v841, %v841
  %v933 = vmul.f32 %v846, %v846
  %v934 = vmul.f32 %v849, %v849
  %v935 = vmul.f32 %v854, %v854
  %v936 = vmul.f32 %v857, %v857
  %v937 = vmul.f32 %v862, %v862
  %v938 = vmul.f32 %v865, %v865
  %v939 = vmul.f32 %v870, %v870
  %v940 = vmul.f32 %v873, %v873
  %v941 = vmul.f32 %v878, %v878
  %v942 = vmul.f32 %v881, %v881
  %v943 = vmul.f32 %v886, %v886
  %v944 = vmul.f32 %v889, %v889
  %v945 = vadd.f32 %v929, %v930
  %v946 = vadd.f32 %v945, %v931
  %v947 = vadd.f32 %v946, %v932
  %v948 = vadd.f32 %v947, %v933
  %v949 = vadd.f32 %v948, %v934
  %v950 = vadd.f32 %v949, %v935
  %v951 = vadd.f32 %v950, %v936
  %v952 = vadd.f32 %v951, %v937
  %v953 = vadd.f32 %v952, %v938
  %v954 = vadd.f32 %v953, %v939
  %v955 = vadd.f32 %v954, %v940
  %v956 = vadd.f32 %v955, %v941
  %v957 = vadd.f32 %v956, %v942
  %v958 = vadd.f32 %v957, %v943
  %v959 = vadd.f32 %v958, %v944
  %v960 = vrot.slane %v959, 4
  %v961 = vadd.f32 %v959, %v960
  %v962 = vrot.slane %v961, 2
  %v963 = vadd.f32 %v961, %v962
  %v964 = vrot.slane %v963, 1
  %v965 = vadd.f32 %v963, %v964
  %966 = vst [vmem:[%s4] sm:$0xff] %v928
  %967 = vst [vmem:[%s5] sm:$0xff] %v965
  // Predicated region
  $region14: #{unet_innermost_forward.2} parent=0 // pred_check
    _
  $region15: #{unet_innermost_forward.2} parent=0 // pred_check_branch
    %969 = sbr.rel (0) target = $region17
  $region16: #{unet_innermost_forward.2} parent=0 // pred_region
    _
  $region17: #{unet_innermost_forward.2} parent=0 // pred_fallthru
    _
  // Predicated region
  $region18: #{unet_innermost_forward.2} parent=0 // pred_check
    _
  $region19: #{unet_innermost_forward.2} parent=0 // pred_check_branch
    %971 = sbr.rel (0) target = $region21
  $region20: #{unet_innermost_forward.2} parent=0 // pred_region
    _
  $region21: #{unet_innermost_forward.2} parent=0 // pred_fallthru
    _
  // Predicated region
  $region22: #{unet_innermost_forward.2} parent=0 // pred_check
    _
  $region23: #{unet_innermost_forward.2} parent=0 // pred_check_branch
    %973 = sbr.rel (0) target = $region25
  $region24: #{unet_innermost_forward.2} parent=0 // pred_region
    _
  $region25: #{unet_innermost_forward.2} parent=0 // pred_fallthru
    _
  // Predicated region
  $region26: #{unet_innermost_forward.2} parent=0 // pred_check
    _
  $region27: #{unet_innermost_forward.2} parent=0 // pred_check_branch
    %975 = sbr.rel (0) target = $region29
  $region28: #{unet_innermost_forward.2} parent=0 // pred_region
    _
  $region29: #{unet_innermost_forward.2} parent=0 // pred_fallthru
    _
  // Predicated region
  $region30: #{unet_innermost_forward.2} parent=0 // pred_check
    _
  $region31: #{unet_innermost_forward.2} parent=0 // pred_check_branch
    %977 = sbr.rel (0) target = $region33
  $region32: #{unet_innermost_forward.2} parent=0 // pred_region
    _
  $region33: #{unet_innermost_forward.2} parent=0 // pred_fallthru
    _
  // Predicated region
  $region34: #{unet_innermost_forward.2} parent=0 // pred_check
    _
  $region35: #{unet_innermost_forward.2} parent=0 // pred_check_branch
    %979 = sbr.rel (0) target = $region37
  $region36: #{unet_innermost_forward.2} parent=0 // pred_region
    _
  $region37: #{unet_innermost_forward.2} parent=0 // pred_fallthru
    _

</llo_original>
